<compile_context>
chip_gen: v7x
topology: tpu7x:2x2x1
jax: 0.10.0
libtpu: 0.0.40
codegen_flags: <defaults>
</compile_context>

<pallas_src>
import functools
import math

import jax
import jax.numpy as jnp
from jax.experimental import pallas as pl
from jax.experimental.pallas import tpu as pltpu


# ----------------------------------------------------------------------------
# Pallas kernels
# ----------------------------------------------------------------------------
def _matmul_bias_kernel(x_ref, w_ref, b_ref, o_ref, acc_ref, *, activation):
    """o = act(x @ w + b), tiled over (M, N, K).  bf16 in, f32 accumulate."""
    k = pl.program_id(2)

    @pl.when(k == 0)
    def _():
        acc_ref[...] = jnp.zeros_like(acc_ref)

    acc_ref[...] += jnp.dot(x_ref[...], w_ref[...],
                            preferred_element_type=jnp.float32)

    @pl.when(k == pl.num_programs(2) - 1)
    def _():
        y = acc_ref[...] + b_ref[...]
        if activation == "gelu":
            # TODO(synk): HF RoBERTa uses exact (erf) GELU; tanh approximation here.
            y = jax.nn.gelu(y, approximate=True)
        o_ref[...] = y.astype(o_ref.dtype)


def _matmul_res_ln_kernel(x_ref, w_ref, bgb_ref, res_ref, o_ref, acc_ref, *, eps):
    """o = LayerNorm(x @ w + bias + res).  Tiled over (M, K); N kept full so
    per-row LN statistics are complete.  bias/gamma/beta arrive packed as one
    (3, N) block; the residual block is K-invariant so it stays resident."""
    k = pl.program_id(1)

    @pl.when(k == 0)
    def _():
        acc_ref[...] = jnp.zeros_like(acc_ref)

    acc_ref[...] += jnp.dot(x_ref[...], w_ref[...],
                            preferred_element_type=jnp.float32)

    @pl.when(k == pl.num_programs(1) - 1)
    def _():
        bias = bgb_ref[0:1]    # (1, N) f32
        gamma = bgb_ref[1:2]
        beta = bgb_ref[2:3]
        y = acc_ref[...] + bias + res_ref[...].astype(jnp.float32)
        mean = jnp.mean(y, axis=-1, keepdims=True)
        var = jnp.mean(jnp.square(y - mean), axis=-1, keepdims=True)
        y = (y - mean) * jax.lax.rsqrt(var + eps) * gamma + beta
        o_ref[...] = y.astype(o_ref.dtype)


def _layernorm_kernel(x_ref, g_ref, b_ref, o_ref, *, eps):
    x = x_ref[...].astype(jnp.float32)
    mean = jnp.mean(x, axis=-1, keepdims=True)
    var = jnp.mean(jnp.square(x - mean), axis=-1, keepdims=True)
    y = (x - mean) * jax.lax.rsqrt(var + eps) * g_ref[...] + b_ref[...]
    o_ref[...] = y.astype(o_ref.dtype)


def _attention_kernel(q_ref, k_ref, v_ref, bias_ref, o_ref, *, hp, dh):
    """One (batch, head-group) block.  q/k/v/o blocks are (S, hp*DH) bf16 slices
    of the (B*S, 3H) QKV projection / (B*S, H) context (no JAX-side transposes).
    The 1/sqrt(DH) scale is already folded into the q projection weights."""
    bias = bias_ref[0]                                   # (1, S) f32
    outs = []
    for i in range(hp):                                  # static unrolled head loop
        sl = slice(i * dh, (i + 1) * dh)
        q = q_ref[:, sl]                                 # (S, DH) bf16
        k = k_ref[:, sl]
        v = v_ref[:, sl]
        scores = jax.lax.dot_general(q, k, (((1,), (1,)), ((), ())),
                                     preferred_element_type=jnp.float32)  # (S, S)
        scores = scores + bias
        scores = scores - jnp.max(scores, axis=-1, keepdims=True)
        p = jnp.exp(scores)
        denom = jnp.sum(p, axis=-1, keepdims=True)
        # TODO(synk): approx reciprocal (~1e-3 rel err) vs exact torch softmax divide.
        p = p * pl.reciprocal(denom, approx=True)
        outs.append(jnp.dot(p.astype(jnp.bfloat16), v,
                            preferred_element_type=jnp.float32))          # (S, DH)
    o_ref[...] = jnp.concatenate(outs, axis=-1).astype(o_ref.dtype)


# ----------------------------------------------------------------------------
# Wrappers around pallas_call
# ----------------------------------------------------------------------------
def _tile(dim, target):
    """Largest clean divisor of `dim` that is <= target (full dim if small)."""
    if dim <= target:
        return dim
    t = target
    while dim % t:
        t //= 2
    return max(t, 1)


def _check_block(dim, blk, name, lane=False):
    req = 128 if lane else 8
    assert blk == dim or blk % req == 0, (
        f"{name}: block {blk} for dim {dim} violates the (8,128) tiling rule")


def matmul_bias(x, w, b, activation=None, out_dtype=jnp.bfloat16,
                tm_t=512, tn_t=512, tk_t=512):
    M, K = x.shape
    N = w.shape[1]
    tm, tn, tk = _tile(M, tm_t), _tile(N, tn_t), _tile(K, tk_t)
    _check_block(M, tm, "matmul_bias.tm")
    _check_block(K, tk, "matmul_bias.tk", lane=True)
    _check_block(N, tn, "matmul_bias.tn", lane=True)
    kernel = functools.partial(_matmul_bias_kernel, activation=activation)
    return pl.pallas_call(
        kernel,
        out_shape=jax.ShapeDtypeStruct((M, N), out_dtype),
        grid_spec=pltpu.PrefetchScalarGridSpec(
            num_scalar_prefetch=0,
            grid=(M // tm, N // tn, K // tk),
            in_specs=[
                pl.BlockSpec((tm, tk), lambda i, j, k: (i, k)),
                pl.BlockSpec((tk, tn), lambda i, j, k: (k, j)),
                pl.BlockSpec((1, tn), lambda i, j, k: (0, j)),
            ],
            out_specs=pl.BlockSpec((tm, tn), lambda i, j, k: (i, j)),
            scratch_shapes=[pltpu.VMEM((tm, tn), jnp.float32)],
        ),
        compiler_params=pltpu.CompilerParams(
            dimension_semantics=("parallel", "parallel", "arbitrary")),
    )(x, w, b.reshape(1, N))


def matmul_res_ln(x, w, bgb, res, out_dtype=jnp.bfloat16,
                  tm_t=512, tk_t=512, eps=1e-5):
    M, K = x.shape
    N = w.shape[1]
    tm, tk = _tile(M, tm_t), _tile(K, tk_t)
    _check_block(M, tm, "matmul_res_ln.tm")
    _check_block(K, tk, "matmul_res_ln.tk", lane=True)
    kernel = functools.partial(_matmul_res_ln_kernel, eps=eps)
    return pl.pallas_call(
        kernel,
        out_shape=jax.ShapeDtypeStruct((M, N), out_dtype),
        grid_spec=pltpu.PrefetchScalarGridSpec(
            num_scalar_prefetch=0,
            grid=(M // tm, K // tk),
            in_specs=[
                pl.BlockSpec((tm, tk), lambda i, k: (i, k)),
                pl.BlockSpec((tk, N), lambda i, k: (k, 0)),
                pl.BlockSpec((3, N), lambda i, k: (0, 0)),   # [bias; gamma; beta]
                pl.BlockSpec((tm, N), lambda i, k: (i, 0)),  # residual (K-invariant)
            ],
            out_specs=pl.BlockSpec((tm, N), lambda i, k: (i, 0)),
            scratch_shapes=[pltpu.VMEM((tm, N), jnp.float32)],
        ),
        compiler_params=pltpu.CompilerParams(
            dimension_semantics=("parallel", "arbitrary")),
    )(x, w, bgb, res)


def layernorm(x, gamma, beta, out_dtype=jnp.bfloat16, tm_t=512, eps=1e-5):
    M, H = x.shape
    tm = _tile(M, tm_t)
    _check_block(M, tm, "layernorm.tm")
    return pl.pallas_call(
        functools.partial(_layernorm_kernel, eps=eps),
        out_shape=jax.ShapeDtypeStruct((M, H), out_dtype),
        grid_spec=pltpu.PrefetchScalarGridSpec(
            num_scalar_prefetch=0,
            grid=(M // tm,),
            in_specs=[pl.BlockSpec((tm, H), lambda i: (i, 0)),
                      pl.BlockSpec((1, H), lambda i: (0, 0)),
                      pl.BlockSpec((1, H), lambda i: (0, 0))],
            out_specs=pl.BlockSpec((tm, H), lambda i: (i, 0)),
        ),
        compiler_params=pltpu.CompilerParams(dimension_semantics=("parallel",)),
    )(x, gamma.reshape(1, H), beta.reshape(1, H))


def _heads_per_block(num_heads, dh):
    """Smallest head-group size giving a lane-dense (multiple-of-128) block."""
    for hp in range(1, num_heads + 1):
        if num_heads % hp == 0 and (hp * dh) % 128 == 0:
            return hp
    raise ValueError(f"head_dim={dh} x num_heads={num_heads} cannot form a "
                     f"128-lane-aligned attention block")


def attention(qkv, attn_bias, *, num_heads, B, S, H):
    """qkv: (B*S, 3H) bf16 fused projection (q already scaled).  Returns the
    per-head attention context written directly into a (B*S, H) bf16 array."""
    DH = H // num_heads
    hp = _heads_per_block(num_heads, DH)
    n_hb = num_heads // hp
    bw = hp * DH
    _check_block(B * S, S, "attention.S")

    kernel = functools.partial(_attention_kernel, hp=hp, dh=DH)

    def qkv_map(col_off):
        return lambda g: (g // n_hb, col_off + g % n_hb)

    return pl.pallas_call(
        kernel,
        out_shape=jax.ShapeDtypeStruct((B * S, H), jnp.bfloat16),
        grid_spec=pltpu.PrefetchScalarGridSpec(
            num_scalar_prefetch=0,
            # Single flattened (batch x head-group) parallel axis: both v7x
            # TensorCores get work even at batch=1.
            grid=(B * n_hb,),
            in_specs=[
                pl.BlockSpec((S, bw), qkv_map(0)),            # q head-group
                pl.BlockSpec((S, bw), qkv_map(n_hb)),         # k head-group
                pl.BlockSpec((S, bw), qkv_map(2 * n_hb)),     # v head-group
                pl.BlockSpec((1, 1, S), lambda g: (g // n_hb, 0, 0)),
            ],
            out_specs=pl.BlockSpec((S, bw), lambda g: (g // n_hb, g % n_hb)),
        ),
        compiler_params=pltpu.CompilerParams(dimension_semantics=("parallel",)),
    )(qkv, qkv, qkv, attn_bias)


# ----------------------------------------------------------------------------
# Model (BERT/RoBERTa post-LN encoder + CLS linear head)
# ----------------------------------------------------------------------------
def encoder_layer(x2d, attn_bias, p, num_heads, B, S):
    H = x2d.shape[1]

    # Fused Q/K/V projection: single (B*S, 3H) matmul; no reshape/transpose.
    qkv = matmul_bias(x2d, p["w_qkv"], p["b_qkv"])               # (B*S, 3H) bf16

    # Per-(batch, head-group) attention, output lands directly in (B*S, H).
    ctx = attention(qkv, attn_bias, num_heads=num_heads, B=B, S=S, H=H)

    # Attention output projection + residual + LayerNorm (fused epilogue).
    h = matmul_res_ln(ctx, p["wo"], p["o_bgb"], x2d)

    # FFN: w1 + bias + GELU fused;  w2 + bias + residual + LayerNorm fused.
    ffn = matmul_bias(h, p["w1"], p["b1"], activation="gelu")
    out = matmul_res_ln(ffn, p["w2"], p["ffn_bgb"], h)
    return out


def roberta_cls_forward(params, input_ids, attention_mask, token_type_ids):
    cfg = params["config"]
    H, NH = cfg["hidden"], cfg["num_heads"]
    B, S = input_ids.shape

    # RoBERTa-style position ids (padding_idx = 1, pads stay at padding_idx).
    padding_idx = 1
    mask_i = attention_mask.astype(jnp.int32)
    position_ids = jnp.cumsum(mask_i, axis=1) * mask_i + padding_idx

    emb = (params["word_emb"][input_ids]
           + params["pos_emb"][position_ids]
           + params["type_emb"][token_type_ids]).astype(jnp.bfloat16)  # (B,S,H)
    x2d = layernorm(emb.reshape(B * S, H),
                    params["emb_ln_g"], params["emb_ln_b"])            # bf16

    # Additive attention bias, HF-style: (1 - mask) * large_negative (f32).
    attn_bias = ((1.0 - attention_mask.astype(jnp.float32)) * -1e9).reshape(B, 1, S)

    for p in params["layers"]:
        x2d = encoder_layer(x2d, attn_bias, p, NH, B, S)

    # features = last_hidden_state[:, 0, :].squeeze(); logit = dense(features)
    x = x2d.reshape(B, S, H)
    features = jnp.squeeze(x[:, 0, :])
    # Tiny (B, num_classes) classifier: plain XLA — a Pallas tile here would be
    # fully masked and launch-overhead dominated.
    logits = jnp.dot(features.astype(jnp.float32), params["cls_w"],
                     preferred_element_type=jnp.float32) + params["cls_b"]
    return logits


# ----------------------------------------------------------------------------
# Deterministic parameter init (synthetic, stands in for from_pretrained)
# and device-layout preparation (QKV fusion, scale folding, bf16 weight cast).
# ----------------------------------------------------------------------------
def init_params(key, *, vocab_size, max_pos, type_vocab, hidden, num_heads,
                ffn, num_layers, num_classes):
    n_keys = 4 + 6 * num_layers
    keys = iter(jax.random.split(key, n_keys))

    def w(shape):
        return jax.random.normal(next(keys), shape, jnp.float32) * 0.02

    params = {
        "config": {"hidden": hidden, "num_heads": num_heads},
        "word_emb": w((vocab_size, hidden)),
        "pos_emb": w((max_pos, hidden)),
        "type_emb": w((type_vocab, hidden)),
        "emb_ln_g": jnp.ones((hidden,), jnp.float32),
        "emb_ln_b": jnp.zeros((hidden,), jnp.float32),
        "cls_w": w((hidden, num_classes)),
        "cls_b": jnp.zeros((num_classes,), jnp.float32),
        "layers": [],
    }
    for _ in range(num_layers):
        params["layers"].append({
            "wq": w((hidden, hidden)), "bq": jnp.zeros((hidden,), jnp.float32),
            "wk": w((hidden, hidden)), "bk": jnp.zeros((hidden,), jnp.float32),
            "wv": w((hidden, hidden)), "bv": jnp.zeros((hidden,), jnp.float32),
            "wo": w((hidden, hidden)), "bo": jnp.zeros((hidden,), jnp.float32),
            "ln1_g": jnp.ones((hidden,), jnp.float32),
            "ln1_b": jnp.zeros((hidden,), jnp.float32),
            "w1": w((hidden, ffn)), "b1": jnp.zeros((ffn,), jnp.float32),
            "w2": w((ffn, hidden)), "b2": jnp.zeros((hidden,), jnp.float32),
            "ln2_g": jnp.ones((hidden,), jnp.float32),
            "ln2_b": jnp.zeros((hidden,), jnp.float32),
        })
    return params


def prepare_params(raw):
    """Fuse Q/K/V weights into one (H, 3H) matrix, fold the 1/sqrt(DH) softmax
    scale into the query projection, pack bias/gamma/beta for the fused
    residual+LN kernels, and cast matmul weights to bfloat16 (MXU fast path).
    Biases, LayerNorm params and embeddings stay f32."""
    bf16 = jnp.bfloat16
    cfg = raw["config"]
    dh = cfg["hidden"] // cfg["num_heads"]
    scale = 1.0 / math.sqrt(dh)
    out = {
        "config": cfg,
        "word_emb": raw["word_emb"],
        "pos_emb": raw["pos_emb"],
        "type_emb": raw["type_emb"],
        "emb_ln_g": raw["emb_ln_g"], "emb_ln_b": raw["emb_ln_b"],
        "cls_w": raw["cls_w"], "cls_b": raw["cls_b"],
        "layers": [],
    }
    for p in raw["layers"]:
        out["layers"].append({
            "w_qkv": jnp.concatenate([p["wq"] * scale, p["wk"], p["wv"]],
                                     axis=1).astype(bf16),
            "b_qkv": jnp.concatenate([p["bq"] * scale, p["bk"], p["bv"]]),
            "wo": p["wo"].astype(bf16),
            "o_bgb": jnp.stack([p["bo"], p["ln1_g"], p["ln1_b"]], axis=0),
            "w1": p["w1"].astype(bf16), "b1": p["b1"],
            "w2": p["w2"].astype(bf16),
            "ffn_bgb": jnp.stack([p["b2"], p["ln2_g"], p["ln2_b"]], axis=0),
        })
    return out


# ----------------------------------------------------------------------------
if __name__ == "__main__":
    # Small but lane-aligned shapes: head_dim=64 (as in RoBERTa-large) so the
    # 2-heads-per-block attention layout is exercised exactly as at full size.
    B, S = 2, 8
    HIDDEN, NUM_HEADS, FFN, LAYERS = 128, 2, 256, 2
    VOCAB, TYPE_VOCAB, NUM_CLASSES = 50, 2, 2
    MAX_POS = S + 4

    key = jax.random.PRNGKey(0)
    pkey, ikey = jax.random.split(key)

    raw_params = init_params(pkey, vocab_size=VOCAB, max_pos=MAX_POS,
                             type_vocab=TYPE_VOCAB, hidden=HIDDEN,
                             num_heads=NUM_HEADS, ffn=FFN, num_layers=LAYERS,
                             num_classes=NUM_CLASSES)
    params = prepare_params(raw_params)

    input_ids = jax.random.randint(ikey, (B, S), 2, VOCAB, dtype=jnp.int32)
    attention_mask = jnp.ones((B, S), jnp.int32).at[1, S - 2:].set(0)  # pad tail of sample 1
    token_type_ids = jnp.zeros((B, S), jnp.int32)

    logits = roberta_cls_forward(params, input_ids, attention_mask, token_type_ids)
    logits = jax.block_until_ready(logits)

    assert logits.shape == (B, NUM_CLASSES), logits.shape
    assert bool(jnp.all(jnp.isfinite(logits)))
    print("KERNEL_OK")
</pallas_src>

<mosaic_0001>
module attributes {stable_mosaic.version = 11 : i64} {
  func.func @_layernorm_kernel(%arg0: i32, %arg1: memref<16x128xbf16, #tpu.memory_space<vmem>>, %arg2: memref<1x128xf32, #tpu.memory_space<vmem>>, %arg3: memref<1x128xf32, #tpu.memory_space<vmem>>, %arg4: memref<16x128xbf16, #tpu.memory_space<vmem>>) attributes {dimension_semantics = [#tpu.dimension_semantics<parallel>], iteration_bounds = array<i64: 1>, scalar_prefetch = 0 : i64, scratch_operands = 0 : i64, tpu.core_type = #tpu.core_type<tc>, window_params = [{transform_indices = @transform_0, window_bounds = array<i64: 16, 128>}, {pipeline_mode = #tpu.pipeline_mode<synchronous>, transform_indices = @transform_1, window_bounds = array<i64: 1, 128>}, {pipeline_mode = #tpu.pipeline_mode<synchronous>, transform_indices = @transform_2, window_bounds = array<i64: 1, 128>}, {transform_indices = @transform_3, window_bounds = array<i64: 16, 128>}]} {
    %c0 = arith.constant 0 : index
    %c0_0 = arith.constant 0 : index
    %0 = vector.load %arg1[%c0, %c0_0] : memref<16x128xbf16, #tpu.memory_space<vmem>>, vector<16x128xbf16>
    %1 = arith.extf %0 : vector<16x128xbf16> to vector<16x128xf32>
    %cst = arith.constant dense<0.000000e+00> : vector<16xf32>
    %2 = vector.multi_reduction <add>, %1, %cst [1] : vector<16x128xf32> to vector<16xf32>
    %3 = vector.shape_cast %2 : vector<16xf32> to vector<16x1xf32>
    %cst_1 = arith.constant 1.280000e+02 : f32
    %4 = vector.broadcast %cst_1 : f32 to vector<16x1xf32>
    %5 = arith.divf %3, %4 : vector<16x1xf32>
    %6 = vector.broadcast %5 : vector<16x1xf32> to vector<16x128xf32>
    %7 = arith.subf %1, %6 : vector<16x128xf32>
    %8 = arith.mulf %7, %7 : vector<16x128xf32>
    %cst_2 = arith.constant dense<0.000000e+00> : vector<16xf32>
    %9 = vector.multi_reduction <add>, %8, %cst_2 [1] : vector<16x128xf32> to vector<16xf32>
    %10 = vector.shape_cast %9 : vector<16xf32> to vector<16x1xf32>
    %cst_3 = arith.constant 1.280000e+02 : f32
    %11 = vector.broadcast %cst_3 : f32 to vector<16x1xf32>
    %12 = arith.divf %10, %11 : vector<16x1xf32>
    %13 = vector.broadcast %5 : vector<16x1xf32> to vector<16x128xf32>
    %14 = arith.subf %1, %13 : vector<16x128xf32>
    %cst_4 = arith.constant 9.99999974E-6 : f32
    %15 = vector.broadcast %cst_4 : f32 to vector<16x1xf32>
    %16 = arith.addf %12, %15 : vector<16x1xf32>
    %17 = math.rsqrt %16 : vector<16x1xf32>
    %18 = vector.broadcast %17 : vector<16x1xf32> to vector<16x128xf32>
    %19 = arith.mulf %14, %18 : vector<16x128xf32>
    %c0_5 = arith.constant 0 : index
    %c0_6 = arith.constant 0 : index
    %20 = vector.load %arg2[%c0_5, %c0_6] : memref<1x128xf32, #tpu.memory_space<vmem>>, vector<1x128xf32>
    %21 = vector.broadcast %20 : vector<1x128xf32> to vector<16x128xf32>
    %22 = arith.mulf %19, %21 : vector<16x128xf32>
    %c0_7 = arith.constant 0 : index
    %c0_8 = arith.constant 0 : index
    %23 = vector.load %arg3[%c0_7, %c0_8] : memref<1x128xf32, #tpu.memory_space<vmem>>, vector<1x128xf32>
    %24 = vector.broadcast %23 : vector<1x128xf32> to vector<16x128xf32>
    %25 = arith.addf %22, %24 : vector<16x128xf32>
    %26 = arith.truncf %25 : vector<16x128xf32> to vector<16x128xbf16>
    %c0_9 = arith.constant 0 : index
    %c0_10 = arith.constant 0 : index
    %27 = vector.load %arg4[%c0_9, %c0_10] : memref<16x128xbf16, #tpu.memory_space<vmem>>, vector<16x128xbf16>
    tpu.vector_store %arg4[%c0_9, %c0_10], %26 {strides = array<i32>} : memref<16x128xbf16, #tpu.memory_space<vmem>>, vector<16x128xbf16>,
    return
  }
  func.func @transform_0(%arg0: i32) -> (i32, i32) {
    %c0_i32 = arith.constant 0 : i32
    %c0_i32_0 = arith.constant 0 : i32
    return %arg0, %c0_i32 : i32, i32
  }
  func.func @transform_1(%arg0: i32) -> (i32, i32) {
    %c0_i32 = arith.constant 0 : i32
    %c0_i32_0 = arith.constant 0 : i32
    %c0_i32_1 = arith.constant 0 : i32
    return %c0_i32, %c0_i32_0 : i32, i32
  }
  func.func @transform_2(%arg0: i32) -> (i32, i32) {
    %c0_i32 = arith.constant 0 : i32
    %c0_i32_0 = arith.constant 0 : i32
    %c0_i32_1 = arith.constant 0 : i32
    return %c0_i32, %c0_i32_0 : i32, i32
  }
  func.func @transform_3(%arg0: i32) -> (i32, i32) {
    %c0_i32 = arith.constant 0 : i32
    %c0_i32_0 = arith.constant 0 : i32
    return %arg0, %c0_i32 : i32, i32
  }
}

</mosaic_0001>

<llo_original>
// kernel: tpu_custom_call.1
$region0: #{tpu_custom_call.1}
  #allocation0 [shape = 'u32[]', space=smem, size = 0x4, offset = 0x4, fixed_abs, tag = 'smem constant byte address 0x4 - core index']
  #allocation1 [shape = 'u32[144,128]{1,0:T(1,128)}', space=vmem, size = 0x12000, scoped, tag = 'internal scratch']
  %s0 = inlined_call_operand.hbm [shape: bf16[16,128], index: 0, kind: input, shape index: {}]
  %s1 = inlined_call_operand.vmem [shape: f32[1,128], index: 1, kind: input, shape index: {}]
  %s2 = inlined_call_operand.vmem [shape: f32[1,128], index: 2, kind: input, shape index: {}]
  %s3 = inlined_call_operand.hbm [shape: bf16[16,128], index: 3, kind: output, shape index: {}]
  %s4 = sld [smem:[#allocation0]]
  $region26: #{tpu_custom_call.1} parent=0
    _
  %s6 = ssub.s32 1, %s4
  %s7 = scalar_select 0, %s6, %s4
  $region1: #{tpu_custom_call.1} parent=0
    #allocation2 [shape = 'u8[4096]{0}', space=vmem, size = 0x1000, scoped, tag = 'input window, operand 0, single buffered']
    #allocation3 [shape = 's32[1]{0}', space=sflag, size = 0x4, scoped, tag = 'scoped memory for tpu_custom_call.1']
    #allocation4 [shape = 's32[1]{0}', space=sflag, size = 0x4, scoped, tag = 'scoped memory for tpu_custom_call.1']
    #allocation5 [shape = 'u8[4096]{0}', space=vmem, size = 0x1000, scoped, tag = 'output window, operand 0, single buffered']
    %8 = vsyncpa [#allocation3], 0
    %9 = vsyncpa [#allocation4], 0
    // Predicated region
    $region2: #{tpu_custom_call.1} parent=1 // pred_check
      _
    $region3: #{tpu_custom_call.1} parent=1 // pred_check_branch
      %11 = sbr.rel (0) target = $region5
    $region4: #{tpu_custom_call.1} parent=1 // pred_region
      %s13 = ssub.s32 128, 128
      %14 = vsyncadd [#allocation3], %s13
      %s15 = sshll.u32 [#allocation2], 4
      %s16 = int_to_ptr.vmem [resolvable:$true] %s15
      %21 = dma.hbm_to_vmem [thread:$0]  %s0, 128, %s16, [#allocation3], 64, 64, 4
    $region5: #{tpu_custom_call.1} parent=1 // pred_fallthru
      _
    // Predicated region
    $region6: #{tpu_custom_call.1} parent=1 // pred_check
      _
    $region7: #{tpu_custom_call.1} parent=1 // pred_check_branch
      %23 = sbr.rel (0) target = $region9
    $region8: #{tpu_custom_call.1} parent=1 // pred_region
      _
    $region9: #{tpu_custom_call.1} parent=1 // pred_fallthru
      _
    // Predicated region
    $region10: #{tpu_custom_call.1} parent=1 // pred_check
      _
    $region11: #{tpu_custom_call.1} parent=1 // pred_check_branch
      %25 = sbr.rel (0) target = $region13
    $region12: #{tpu_custom_call.1} parent=1 // pred_region
      _
    $region13: #{tpu_custom_call.1} parent=1 // pred_fallthru
      _
    // Predicated region
    $region14: #{tpu_custom_call.1} parent=1 // pred_check
      _
    $region15: #{tpu_custom_call.1} parent=1 // pred_check_branch
      %27 = sbr.rel (0) target = $region17
    $region16: #{tpu_custom_call.1} parent=1 // pred_region
      %28 = dma.done [#allocation3], 128
    $region17: #{tpu_custom_call.1} parent=1 // pred_fallthru
      _
    %v29 = vld [vmem:[#allocation2] sm:$0xf]
    %v30 = vld [vmem:[#allocation2 + $0x4] sm:$0xf]
    %v31 = vunpack.c.l.bf16 %v29
    %v32 = vunpack.c.l.bf16 %v30
    %33 = vadd.xlane.f32.xlu0 %v31
    %v34 = vpop.xlane.xlu0 %33
    %35 = vadd.xlane.f32.xlu0 %v32
    %v36 = vpop.xlane.xlu0 %35
    %v37 = vrcp.pop 128.0
    %v38 = vmul.f32 %v34, %v37
    %v39 = vmul.f32 %v36, %v37
    %v40 = vsub.f32 %v31, %v38
    %v41 = vsub.f32 %v32, %v39
    %v42 = vmul.f32 %v40, %v40
    %v43 = vmul.f32 %v41, %v41
    %44 = vadd.xlane.f32.xlu0 %v42
    %v45 = vpop.xlane.xlu0 %44
    %46 = vadd.xlane.f32.xlu0 %v43
    %v47 = vpop.xlane.xlu0 %46
    %v48 = vmul.f32 %v45, %v37
    %v49 = vmul.f32 %v47, %v37
    %v50 = vadd.f32 %v48, 1e-05
    %v51 = vadd.f32 %v49, 1e-05
    %v52 = vrsqrt.pop %v50
    %v53 = vrsqrt.pop %v51
    %v54 = vmul.f32 %v40, %v52
    %v55 = vmul.f32 %v41, %v53
    %v56 = vld [vmem:[%s1] sm:$0x1]
    %v58 = vlaneseq
    %v59 = vshrl.u32 %v58, 7
    %v60 = vsub.s32 0, %v59
    %v61 = vrot.slane %v56, %v60
    %v63 = vmul.f32 %v54, %v61
    %v64 = vmul.f32 %v55, %v61
    %v65 = vld [vmem:[%s2] sm:$0x1]
    %v67 = vlaneseq
    %v68 = vshrl.u32 %v67, 7
    %v69 = vsub.s32 0, %v68
    %v70 = vrot.slane %v65, %v69
    %v72 = vadd.f32 %v63, %v70
    %v73 = vadd.f32 %v64, %v70
    %v74 = vpack.c.bf16 %v73, %v72
    %v76 = vunpack.c.l.b16 %v74
    %v77 = vunpack.c.h.b16 %v74
    %v78 = vpack.c.b16 %v76, %v76
    %v79 = vpack.c.b16 %v77, %v77
    %82 = vst [vmem:[#allocation5] sm:$0xf] %v78
    %83 = vst [vmem:[#allocation5 + $0x4] sm:$0xf] %v79
    // Predicated region
    $region18: #{tpu_custom_call.1} parent=1 // pred_check
      _
    $region19: #{tpu_custom_call.1} parent=1 // pred_check_branch
      %85 = sbr.rel (0) target = $region21
    $region20: #{tpu_custom_call.1} parent=1 // pred_region
      %s87 = ssub.s32 128, 128
      %88 = vsyncadd [#allocation4], %s87
      %s89 = sshll.u32 [#allocation5], 4
      %s90 = int_to_ptr.vmem [resolvable:$true] %s89
      %95 = dma.vmem_to_hbm [thread:$0]  %s90, 128, %s3, [#allocation4], 64, 64, 4
    $region21: #{tpu_custom_call.1} parent=1 // pred_fallthru
      _
    // Predicated region
    $region22: #{tpu_custom_call.1} parent=1 // pred_check
      _
    $region23: #{tpu_custom_call.1} parent=1 // pred_check_branch
      %97 = sbr.rel (0) target = $region25
    $region24: #{tpu_custom_call.1} parent=1 // pred_region
      %98 = dma.done [#allocation4], 128
    $region25: #{tpu_custom_call.1} parent=1 // pred_fallthru
      _
    %99 = vsyncpa [#allocation3], 1
    %100 = vsyncpa [#allocation4], 1

</llo_original>
